<compile_context>
chip_gen: v5e
topology: v5e:2x2
jax: 0.10.0
libtpu: 0.0.40
codegen_flags: <defaults>
</compile_context>

<pallas_src>
import jax
import jax.numpy as jnp
from jax.experimental import pallas as pl
from jax.experimental.pallas import tpu as pltpu

EPS = 1e-5  # nn.LayerNorm default


def prenorm_linear_kernel(x_ref, g_ref, b_ref, w_ref, wb_ref, o_ref, n_ref):
    # x_ref : (TR, D)   row tile of the input
    # g_ref, b_ref : (1, D)   LayerNorm affine params
    # w_ref : (D, TN)   column slice of W^T (already in the matmul dtype)
    # wb_ref: (1, TN)   Linear bias slice
    # o_ref : (TR, TN)  output tile
    # n_ref : (TR, D)   scratch holding the normalized rows in the matmul dtype
    j = pl.program_id(1)

    # LayerNorm once per row tile; reuse for all output-column tiles.
    @pl.when(j == 0)
    def _():
        x = x_ref[...].astype(jnp.float32)
        d = x.shape[-1]
        mean = jnp.sum(x, axis=-1, keepdims=True) * (1.0 / d)
        xm = x - mean
        var = jnp.sum(xm * xm, axis=-1, keepdims=True) * (1.0 / d)  # centered, biased
        inv = jax.lax.rsqrt(var + EPS)
        g = g_ref[...].astype(jnp.float32)
        b = b_ref[...].astype(jnp.float32)
        # gamma folded into the rsqrt factor
        n_ref[...] = (xm * (inv * g) + b).astype(n_ref.dtype)

    # fn = Linear(dim, dim): y = normed @ W^T + bias (w_ref holds a slice of W^T).
    y = jnp.dot(n_ref[...], w_ref[...], preferred_element_type=jnp.float32)
    o_ref[...] = (y + wb_ref[...].astype(jnp.float32)).astype(o_ref.dtype)


def _round_up(n, m):
    return ((n + m - 1) // m) * m


def _vmem_budget():
    # ~80% of the per-core VMEM capacity: >64 MiB on v5e/v6e (128 MiB physical),
    # ~51 MiB on v7x (64 MiB physical, headroom for compiler scratch).
    cap = 64 << 20
    try:
        cap = int(pltpu.get_tpu_info().vmem_capacity_bytes)
    except Exception:
        pass
    return max(32 << 20, int(cap * 0.8))


def _largest_divisor_multiple(n, base, cap):
    # Largest multiple of `base` that divides n and is <= cap; 0 if none.
    best = 0
    c = base
    while c <= min(cap, n):
        if n % c == 0:
            best = c
        c += base
    return best


def prenorm(x, gamma, beta, w_t, w_bias, *, matmul_dtype=jnp.bfloat16,
            out_dtype=None, tile_rows=None, tile_cols=None):
    """PreNorm(dim, Linear(dim, n_out)) forward: Linear(LayerNorm(x))."""
    B, S, D = x.shape
    R = B * S
    N = w_t.shape[1]
    out_dtype = x.dtype if out_dtype is None else out_dtype

    x2 = x.reshape(R, D)
    x_item = jnp.dtype(x.dtype).itemsize
    mm_item = jnp.dtype(matmul_dtype).itemsize
    out_item = jnp.dtype(out_dtype).itemsize

    budget = _vmem_budget()

    # Pad output columns to a lane-dense multiple of 128 (unmasked vst).
    N_pad = _round_up(N, 128)
    w_mm = w_t.astype(matmul_dtype)
    wb2 = w_bias.reshape(1, N).astype(jnp.float32)
    if N_pad != N:
        w_mm = jnp.pad(w_mm, ((0, 0), (0, N_pad - N)))
        wb2 = jnp.pad(wb2, ((0, 0), (0, N_pad - N)))

    # Column tiling: keep the whole weight resident in VMEM when it fits
    # (constant (0, 0) index map -> exactly one HBM fetch); otherwise prefer
    # MXU-sized 256-wide column tiles, 128 as fallback.
    if tile_cols is None:
        if D * N_pad * mm_item <= budget // 4:
            tile_cols = N_pad
        else:
            tc = _largest_divisor_multiple(N_pad, 256, 1024)
            if tc == 0:
                tc = _largest_divisor_multiple(N_pad, 128, 512)
            tile_cols = tc if tc else N_pad
    n_col_tiles = N_pad // tile_cols

    # Row tiling: multiples of 16 (bf16 scratch sublane packing); grow toward
    # 1024 subject to the per-generation VMEM budget.
    if tile_rows is None:
        tile_rows = 1024
    tile_rows = max(16, (int(tile_rows) // 16) * 16)
    tile_rows = min(tile_rows, _round_up(R, 16))

    def _fits(tr):
        need = (2 * tr * D * x_item               # x tile, double buffered
                + 2 * D * tile_cols * mm_item     # W^T tile, double buffered
                + 2 * tr * tile_cols * out_item   # out tile, double buffered
                + tr * D * mm_item                # normalized scratch
                + 8 * max(D, N_pad) * 4)          # params + slack
        return need <= budget

    while tile_rows > 16 and not _fits(tile_rows):
        tile_rows = max(16, ((tile_rows // 2) // 16) * 16)

    R_pad = _round_up(R, tile_rows)
    n_row_tiles = R_pad // tile_rows
    # Even row-tile count -> the "parallel" axis splits evenly across v7x's two
    # TensorCores (no effect on single-core v5e/v6e beyond a cheap pad tile).
    if n_row_tiles > 1 and n_row_tiles % 2 == 1:
        n_row_tiles += 1
        R_pad = n_row_tiles * tile_rows
    if R_pad != R:
        # NOTE: padded rows have var == 0 -> rsqrt(eps) produces large (finite)
        # values that flow through the matmul; they are sliced off below, so do
        # not remove the final [:R] slice.
        x2 = jnp.pad(x2, ((0, R_pad - R), (0, 0)))

    gamma2 = gamma.reshape(1, D)
    beta2 = beta.reshape(1, D)

    out = pl.pallas_call(
        prenorm_linear_kernel,
        out_shape=jax.ShapeDtypeStruct((R_pad, N_pad), out_dtype),
        grid_spec=pltpu.PrefetchScalarGridSpec(
            num_scalar_prefetch=0,
            grid=(n_row_tiles, n_col_tiles),
            in_specs=[
                pl.BlockSpec((tile_rows, D), lambda i, j: (i, 0)),       # x rows
                pl.BlockSpec((1, D), lambda i, j: (0, 0)),               # gamma
                pl.BlockSpec((1, D), lambda i, j: (0, 0)),               # beta
                pl.BlockSpec((D, tile_cols), lambda i, j: (0, j)),       # W^T slice
                pl.BlockSpec((1, tile_cols), lambda i, j: (0, j)),       # bias slice
            ],
            out_specs=pl.BlockSpec((tile_rows, tile_cols), lambda i, j: (i, j)),
            scratch_shapes=[pltpu.VMEM((tile_rows, D), matmul_dtype)],
        ),
        compiler_params=pltpu.CompilerParams(
            dimension_semantics=("parallel", "arbitrary"),
            vmem_limit_bytes=int(budget),
        ),
    )(x2, gamma2, beta2, w_mm, wb2)

    if R_pad != R or N_pad != N:
        out = out[:R, :N]
    return out.reshape(B, S, N)


def prenorm_ref(x, gamma, beta, w_t, w_bias, matmul_dtype=jnp.float32):
    xf = x.astype(jnp.float32)
    mean = jnp.mean(xf, axis=-1, keepdims=True)
    var = jnp.mean((xf - mean) ** 2, axis=-1, keepdims=True)
    n = (xf - mean) * jax.lax.rsqrt(var + EPS) * gamma.astype(jnp.float32) \
        + beta.astype(jnp.float32)
    y = jnp.dot(n.astype(matmul_dtype), w_t.astype(matmul_dtype),
                preferred_element_type=jnp.float32)
    return (y + w_bias.astype(jnp.float32)).astype(x.dtype)


if __name__ == "__main__":
    key = jax.random.PRNGKey(0)

    def make_case(B, S, D, key):
        kx, kw, kb = jax.random.split(key, 3)
        x = jax.random.normal(kx, (B, S, D), dtype=jnp.float32)
        gamma = jnp.ones((D,), jnp.float32)          # PyTorch LayerNorm default init
        beta = jnp.zeros((D,), jnp.float32)
        w = jax.random.normal(kw, (D, D), dtype=jnp.float32) * (1.0 / jnp.sqrt(D))
        w_bias = jax.random.normal(kb, (D,), dtype=jnp.float32) * 0.01
        return x, gamma, beta, w.T, w_bias

    # Case 1: lane-dense demo shape (D multiple of 128), resident weight.
    x, gamma, beta, w_t, w_bias = make_case(2, 8, 128, key)
    out = jax.block_until_ready(prenorm(x, gamma, beta, w_t, w_bias))
    ref_mm = prenorm_ref(x, gamma, beta, w_t, w_bias, matmul_dtype=jnp.bfloat16)
    ref_f32 = prenorm_ref(x, gamma, beta, w_t, w_bias, matmul_dtype=jnp.float32)
    assert jnp.allclose(out, ref_mm, atol=1e-2, rtol=1e-2), "case1: mismatch vs bf16-matmul ref"
    assert jnp.allclose(out, ref_f32, atol=5e-2, rtol=5e-2), "case1: mismatch vs f32 ref"

    # Case 2: row count not a multiple of the tile (exercises padding/slicing).
    x, gamma, beta, w_t, w_bias = make_case(2, 5, 256, jax.random.PRNGKey(1))
    out = jax.block_until_ready(prenorm(x, gamma, beta, w_t, w_bias))
    ref_mm = prenorm_ref(x, gamma, beta, w_t, w_bias, matmul_dtype=jnp.bfloat16)
    assert jnp.allclose(out, ref_mm, atol=1e-2, rtol=1e-2), "case2: mismatch vs bf16-matmul ref"

    print("KERNEL_OK")
</pallas_src>

<mosaic_0001>
module attributes {stable_mosaic.version = 11 : i64} {
  func.func @prenorm_linear_kernel(%arg0: i32, %arg1: i32, %arg2: memref<16x128xf32, #tpu.memory_space<vmem>>, %arg3: memref<1x128xf32, #tpu.memory_space<vmem>>, %arg4: memref<1x128xf32, #tpu.memory_space<vmem>>, %arg5: memref<128x128xbf16, #tpu.memory_space<vmem>>, %arg6: memref<1x128xf32, #tpu.memory_space<vmem>>, %arg7: memref<16x128xf32, #tpu.memory_space<vmem>>, %arg8: memref<16x128xbf16, #tpu.memory_space<vmem>>) attributes {dimension_semantics = [#tpu.dimension_semantics<parallel>, #tpu.dimension_semantics<arbitrary>], iteration_bounds = array<i64: 1, 1>, scalar_prefetch = 0 : i64, scratch_operands = 1 : i64, tpu.core_type = #tpu.core_type<tc>, window_params = [{transform_indices = @transform_0, window_bounds = array<i64: 16, 128>}, {pipeline_mode = #tpu.pipeline_mode<synchronous>, transform_indices = @transform_1, window_bounds = array<i64: 1, 128>}, {pipeline_mode = #tpu.pipeline_mode<synchronous>, transform_indices = @transform_2, window_bounds = array<i64: 1, 128>}, {transform_indices = @transform_3, window_bounds = array<i64: 128, 128>}, {transform_indices = @transform_4, window_bounds = array<i64: 1, 128>}, {transform_indices = @transform_5, window_bounds = array<i64: 16, 128>}]} {
    %c0_i32 = arith.constant 0 : i32
    %0 = arith.cmpi eq, %arg1, %c0_i32 : i32
    %1 = arith.extui %0 : i1 to i32
    %c0_i32_0 = arith.constant 0 : i32
    %2 = arith.cmpi ne, %1, %c0_i32_0 : i32
    scf.if %2 {
      %c0_8 = arith.constant 0 : index
      %c0_9 = arith.constant 0 : index
      %10 = vector.load %arg2[%c0_8, %c0_9] : memref<16x128xf32, #tpu.memory_space<vmem>>, vector<16x128xf32>
      %cst_10 = arith.constant dense<0.000000e+00> : vector<16xf32>
      %11 = vector.multi_reduction <add>, %10, %cst_10 [1] : vector<16x128xf32> to vector<16xf32>
      %12 = vector.shape_cast %11 : vector<16xf32> to vector<16x1xf32>
      %cst_11 = arith.constant 7.812500e-03 : f32
      %13 = vector.broadcast %cst_11 : f32 to vector<16x1xf32>
      %14 = arith.mulf %12, %13 : vector<16x1xf32>
      %15 = vector.broadcast %14 : vector<16x1xf32> to vector<16x128xf32>
      %16 = arith.subf %10, %15 : vector<16x128xf32>
      %17 = arith.mulf %16, %16 : vector<16x128xf32>
      %cst_12 = arith.constant dense<0.000000e+00> : vector<16xf32>
      %18 = vector.multi_reduction <add>, %17, %cst_12 [1] : vector<16x128xf32> to vector<16xf32>
      %19 = vector.shape_cast %18 : vector<16xf32> to vector<16x1xf32>
      %cst_13 = arith.constant 7.812500e-03 : f32
      %20 = vector.broadcast %cst_13 : f32 to vector<16x1xf32>
      %21 = arith.mulf %19, %20 : vector<16x1xf32>
      %cst_14 = arith.constant 9.99999974E-6 : f32
      %22 = vector.broadcast %cst_14 : f32 to vector<16x1xf32>
      %23 = arith.addf %21, %22 : vector<16x1xf32>
      %24 = math.rsqrt %23 : vector<16x1xf32>
      %c0_15 = arith.constant 0 : index
      %c0_16 = arith.constant 0 : index
      %25 = vector.load %arg3[%c0_15, %c0_16] : memref<1x128xf32, #tpu.memory_space<vmem>>, vector<1x128xf32>
      %c0_17 = arith.constant 0 : index
      %c0_18 = arith.constant 0 : index
      %26 = vector.load %arg4[%c0_17, %c0_18] : memref<1x128xf32, #tpu.memory_space<vmem>>, vector<1x128xf32>
      %27 = vector.broadcast %24 : vector<16x1xf32> to vector<16x128xf32>
      %28 = vector.broadcast %25 : vector<1x128xf32> to vector<16x128xf32>
      %29 = arith.mulf %27, %28 : vector<16x128xf32>
      %30 = arith.mulf %16, %29 : vector<16x128xf32>
      %31 = vector.broadcast %26 : vector<1x128xf32> to vector<16x128xf32>
      %32 = arith.addf %30, %31 : vector<16x128xf32>
      %33 = arith.truncf %32 : vector<16x128xf32> to vector<16x128xbf16>
      %c0_19 = arith.constant 0 : index
      %c0_20 = arith.constant 0 : index
      %34 = vector.load %arg8[%c0_19, %c0_20] : memref<16x128xbf16, #tpu.memory_space<vmem>>, vector<16x128xbf16>
      tpu.vector_store %arg8[%c0_19, %c0_20], %33 {strides = array<i32>} : memref<16x128xbf16, #tpu.memory_space<vmem>>, vector<16x128xbf16>,
    } else {
    }
    %c0 = arith.constant 0 : index
    %c0_1 = arith.constant 0 : index
    %3 = vector.load %arg8[%c0, %c0_1] : memref<16x128xbf16, #tpu.memory_space<vmem>>, vector<16x128xbf16>
    %c0_2 = arith.constant 0 : index
    %c0_3 = arith.constant 0 : index
    %4 = vector.load %arg5[%c0_2, %c0_3] : memref<128x128xbf16, #tpu.memory_space<vmem>>, vector<128x128xbf16>
    %cst = arith.constant dense<0.000000e+00> : vector<16x128xf32>
    %5 = tpu.matmul %3, %4, %cst {dimension_numbers = #tpu.dot_dimension_numbers<[1], [0], [0], [1], [0, 0, 1, 1], [], []>} : vector<16x128xbf16>, vector<128x128xbf16>, vector<16x128xf32> -> vector<16x128xf32>
    %c0_4 = arith.constant 0 : index
    %c0_5 = arith.constant 0 : index
    %6 = vector.load %arg6[%c0_4, %c0_5] : memref<1x128xf32, #tpu.memory_space<vmem>>, vector<1x128xf32>
    %7 = vector.broadcast %6 : vector<1x128xf32> to vector<16x128xf32>
    %8 = arith.addf %5, %7 : vector<16x128xf32>
    %c0_6 = arith.constant 0 : index
    %c0_7 = arith.constant 0 : index
    %9 = vector.load %arg7[%c0_6, %c0_7] : memref<16x128xf32, #tpu.memory_space<vmem>>, vector<16x128xf32>
    tpu.vector_store %arg7[%c0_6, %c0_7], %8 {strides = array<i32>} : memref<16x128xf32, #tpu.memory_space<vmem>>, vector<16x128xf32>,
    return
  }
  func.func @transform_0(%arg0: i32, %arg1: i32) -> (i32, i32) {
    %c0_i32 = arith.constant 0 : i32
    %c0_i32_0 = arith.constant 0 : i32
    return %arg0, %c0_i32 : i32, i32
  }
  func.func @transform_1(%arg0: i32, %arg1: i32) -> (i32, i32) {
    %c0_i32 = arith.constant 0 : i32
    %c0_i32_0 = arith.constant 0 : i32
    %c0_i32_1 = arith.constant 0 : i32
    return %c0_i32, %c0_i32_0 : i32, i32
  }
  func.func @transform_2(%arg0: i32, %arg1: i32) -> (i32, i32) {
    %c0_i32 = arith.constant 0 : i32
    %c0_i32_0 = arith.constant 0 : i32
    %c0_i32_1 = arith.constant 0 : i32
    return %c0_i32, %c0_i32_0 : i32, i32
  }
  func.func @transform_3(%arg0: i32, %arg1: i32) -> (i32, i32) {
    %c0_i32 = arith.constant 0 : i32
    %c0_i32_0 = arith.constant 0 : i32
    return %c0_i32, %arg1 : i32, i32
  }
  func.func @transform_4(%arg0: i32, %arg1: i32) -> (i32, i32) {
    %c0_i32 = arith.constant 0 : i32
    %c0_i32_0 = arith.constant 0 : i32
    return %c0_i32, %arg1 : i32, i32
  }
  func.func @transform_5(%arg0: i32, %arg1: i32) -> (i32, i32) {
    %c0_i32 = arith.constant 0 : i32
    return %arg0, %arg1 : i32, i32
  }
}

</mosaic_0001>

<llo_original>
// kernel: tpu_custom_call.1
$region0: #{tpu_custom_call.1}
  #allocation0 [shape = 'u32[]', space=smem, size = 0x4, offset = 0x4, fixed_abs, tag = 'smem constant byte address 0x4 - core index']
  #allocation1 [shape = 'u32[72,128]{1,0:T(1,128)}', space=vmem, size = 0x9000, scoped, tag = 'internal scratch']
  #allocation2 [shape = 'bf16[16,128]{1,0:T(8,128)(2,1)}', space=vmem, size = 0x1000, scoped, tag = 'scratch operand']
  %s0 = inlined_call_operand.hbm [shape: f32[16,128], index: 0, kind: input, shape index: {}]
  %s1 = inlined_call_operand.hbm [shape: f32[1,128], index: 1, kind: input, shape index: {}]
  %s2 = inlined_call_operand.vmem [shape: f32[1,128], index: 2, kind: input, shape index: {}]
  %s3 = inlined_call_operand.hbm [shape: bf16[128,128], index: 3, kind: input, shape index: {}]
  %s4 = inlined_call_operand.vmem [shape: f32[1,128], index: 4, kind: input, shape index: {}]
  %s5 = inlined_call_operand.hbm [shape: f32[16,128], index: 5, kind: output, shape index: {}]
  %s6 = sld [smem:[#allocation0]]
  $region46: #{tpu_custom_call.1} parent=0
    _
  %s8 = ssub.s32 1, %s6
  %s9 = scalar_select 0, %s8, %s6
  $region1: #{tpu_custom_call.1} parent=0
    #allocation3 [shape = 'u8[8192]{0}', space=vmem, size = 0x2000, scoped, tag = 'input window, operand 0, single buffered']
    #allocation4 [shape = 's32[1]{0}', space=sflag, size = 0x4, scoped, tag = 'scoped memory for tpu_custom_call.1']
    #allocation5 [shape = 's32[1]{0}', space=sflag, size = 0x4, scoped, tag = 'scoped memory for tpu_custom_call.1']
    #allocation6 [shape = 'u8[512]{0}', space=vmem, size = 0x400, scoped, tag = 'input window, operand 1, single buffered']
    #allocation7 [shape = 's32[1]{0}', space=sflag, size = 0x4, scoped, tag = 'scoped memory for tpu_custom_call.1']
    #allocation8 [shape = 'u8[32768]{0}', space=vmem, size = 0x8000, scoped, tag = 'input window, operand 3, single buffered']
    #allocation9 [shape = 'u8[8192]{0}', space=vmem, size = 0x2000, scoped, tag = 'output window, operand 0, single buffered']
    %10 = vsyncpa [#allocation4], 0
    %11 = vsyncpa [#allocation7], 0
    %12 = vsyncpa [#allocation5], 0
    // Predicated region
    $region2: #{tpu_custom_call.1} parent=1 // pred_check
      _
    $region3: #{tpu_custom_call.1} parent=1 // pred_check_branch
      %14 = sbr.rel (0) target = $region5
    $region4: #{tpu_custom_call.1} parent=1 // pred_region
      %16 = vsyncadd [#allocation4], 0
      %s17 = sshll.u32 %s0, 4
      %s18 = int_to_ptr.hbm [resolvable:$true] %s17
      %s19 = sshll.u32 [#allocation3], 4
      %s20 = int_to_ptr.vmem [resolvable:$true] %s19
      %25 = dma.hbm_to_vmem [thread:$0]  %s18, 256, %s20, [#allocation4], 128, 128, 8
    $region5: #{tpu_custom_call.1} parent=1 // pred_fallthru
      _
    // Predicated region
    $region6: #{tpu_custom_call.1} parent=1 // pred_check
      _
    $region7: #{tpu_custom_call.1} parent=1 // pred_check_branch
      %27 = sbr.rel (0) target = $region9
    $region8: #{tpu_custom_call.1} parent=1 // pred_region
      %29 = vsyncadd [#allocation7], 0
      %s31 = sshll.u32 %s1, 4
      %s32 = int_to_ptr.hbm [resolvable:$true] %s31
      %s33 = sshll.u32 [#allocation6], 4
      %s34 = int_to_ptr.vmem [resolvable:$true] %s33
      %36 = dma.hbm_to_vmem [thread:$0]  %s32, 16, %s34, [#allocation7]
    $region9: #{tpu_custom_call.1} parent=1 // pred_fallthru
      _
    // Predicated region
    $region10: #{tpu_custom_call.1} parent=1 // pred_check
      _
    $region11: #{tpu_custom_call.1} parent=1 // pred_check_branch
      %38 = sbr.rel (0) target = $region13
    $region12: #{tpu_custom_call.1} parent=1 // pred_region
      _
    $region13: #{tpu_custom_call.1} parent=1 // pred_fallthru
      _
    // Predicated region
    $region14: #{tpu_custom_call.1} parent=1 // pred_check
      _
    $region15: #{tpu_custom_call.1} parent=1 // pred_check_branch
      %40 = sbr.rel (0) target = $region17
    $region16: #{tpu_custom_call.1} parent=1 // pred_region
      %42 = vsyncadd [#allocation7], 0
      %s43 = sshll.u32 %s3, 4
      %s44 = int_to_ptr.hbm [resolvable:$true] %s43
      %s45 = sshll.u32 [#allocation8], 4
      %s46 = int_to_ptr.vmem [resolvable:$true] %s45
      %51 = dma.hbm_to_vmem [thread:$0]  %s44, 1024, %s46, [#allocation7], 64, 64, 4
    $region17: #{tpu_custom_call.1} parent=1 // pred_fallthru
      _
    // Predicated region
    $region18: #{tpu_custom_call.1} parent=1 // pred_check
      _
    $region19: #{tpu_custom_call.1} parent=1 // pred_check_branch
      %53 = sbr.rel (0) target = $region21
    $region20: #{tpu_custom_call.1} parent=1 // pred_region
      _
    $region21: #{tpu_custom_call.1} parent=1 // pred_fallthru
      _
    // Predicated region
    $region22: #{tpu_custom_call.1} parent=1 // pred_check
      _
    $region23: #{tpu_custom_call.1} parent=1 // pred_check_branch
      %55 = sbr.rel (0) target = $region25
    $region24: #{tpu_custom_call.1} parent=1 // pred_region
      %57 = dma.done [#allocation4], 256
    $region25: #{tpu_custom_call.1} parent=1 // pred_fallthru
      _
    // Predicated region
    $region26: #{tpu_custom_call.1} parent=1 // pred_check
      _
    $region27: #{tpu_custom_call.1} parent=1 // pred_check_branch
      %59 = sbr.rel (0) target = $region29
    $region28: #{tpu_custom_call.1} parent=1 // pred_region
      %61 = dma.done [#allocation7], 16
    $region29: #{tpu_custom_call.1} parent=1 // pred_fallthru
      _
    // Predicated region
    $region30: #{tpu_custom_call.1} parent=1 // pred_check
      _
    $region31: #{tpu_custom_call.1} parent=1 // pred_check_branch
      %63 = sbr.rel (0) target = $region33
    $region32: #{tpu_custom_call.1} parent=1 // pred_region
      %65 = dma.done [#allocation7], 1024
    $region33: #{tpu_custom_call.1} parent=1 // pred_fallthru
      _
    %p66 = scmp.eq.s32.totalorder 0, 0
    // Predicated region
    $region34: #{tpu_custom_call.1} parent=1 // pred_check
      %p67 = pneg %p66
    $region35: #{tpu_custom_call.1} parent=1 // pred_check_branch
      %69 = sbr.rel (%p67) target = $region37
    $region36: #{tpu_custom_call.1} parent=1 // pred_region
      %v70 = vld [vmem:[#allocation3] sm:$0xff]
      %v71 = vld [vmem:[#allocation3 + $0x8] sm:$0xff]
      %72 = vadd.xlane.f32.xlu0 %v70
      %v73 = vpop.xlane.xlu0 %72
      %74 = vadd.xlane.f32.xlu0 %v71
      %v75 = vpop.xlane.xlu0 %74
      %v76 = vmul.f32 %v73, 0.0078125
      %v77 = vmul.f32 %v75, 0.0078125
      %v78 = vsub.f32 %v70, %v76
      %v79 = vsub.f32 %v71, %v77
      %v80 = vmul.f32 %v78, %v78
      %v81 = vmul.f32 %v79, %v79
      %82 = vadd.xlane.f32.xlu0 %v80
      %v83 = vpop.xlane.xlu0 %82
      %84 = vadd.xlane.f32.xlu0 %v81
      %v85 = vpop.xlane.xlu0 %84
      %v86 = vmul.f32 %v83, 0.0078125
      %v87 = vmul.f32 %v85, 0.0078125
      %v88 = vadd.f32 %v86, 1e-05
      %v89 = vadd.f32 %v87, 1e-05
      %v90 = vrsqrt.pop %v88
      %v91 = vmul.f32 %v90, %v88
      %v92 = vmul.f32 %v91, %v90
      %v93 = vmul.f32 0.5, %v92
      %v94 = vsub.f32 1.5, %v93
      %v95 = vmul.f32 %v90, %v94
      %vm96 = vweird.f32 %v88
      %vm97 = vweird.f32 %v90
      %vm98 = vmor %vm96, %vm97
      %v99 = vsel %vm98, %v90, %v95
      %v100 = vrsqrt.pop %v89
      %v101 = vmul.f32 %v100, %v89
      %v102 = vmul.f32 %v101, %v100
      %v103 = vmul.f32 0.5, %v102
      %v104 = vsub.f32 1.5, %v103
      %v105 = vmul.f32 %v100, %v104
      %vm106 = vweird.f32 %v89
      %vm107 = vweird.f32 %v100
      %vm108 = vmor %vm106, %vm107
      %v109 = vsel %vm108, %v100, %v105
      %v110 = vld [vmem:[#allocation6] sm:$0x1]
      %v111 = vld [vmem:[%s2] sm:$0x1]
      %v113 = vperm.slane %v110, 0
      %v115 = vmul.f32 %v99, %v113
      %v116 = vmul.f32 %v109, %v113
      %v117 = vmul.f32 %v78, %v115
      %v118 = vmul.f32 %v79, %v116
      %v120 = vperm.slane %v111, 0
      %v122 = vadd.f32 %v117, %v120
      %v123 = vadd.f32 %v118, %v120
      %v124 = vpack.c.bf16 %v122, %v122
      %v125 = vpack.c.bf16 %v123, %v123
      %126 = vst [vmem:[#allocation2] sm:$0xf] %v124
      %127 = vst [vmem:[#allocation2 + $0x4] sm:$0xf] %v125
    $region37: #{tpu_custom_call.1} parent=1 // pred_fallthru
      _
    %v128 = vld [vmem:[#allocation2] sm:$0xf]
    %v129 = vld [vmem:[#allocation2 + $0x4] sm:$0xf]
    %v130 = vld [vmem:[#allocation8] sm:$0xf]
    %v131 = vld [vmem:[#allocation8 + $0x4] sm:$0xf]
    %v132 = vld [vmem:[#allocation8 + $0x8] sm:$0xf]
    %v133 = vld [vmem:[#allocation8 + $0xc] sm:$0xf]
    %v134 = vld [vmem:[#allocation8 + $0x10] sm:$0xf]
    %v135 = vld [vmem:[#allocation8 + $0x14] sm:$0xf]
    %v136 = vld [vmem:[#allocation8 + $0x18] sm:$0xf]
    %v137 = vld [vmem:[#allocation8 + $0x1c] sm:$0xf]
    %v138 = vld [vmem:[#allocation8 + $0x20] sm:$0xf]
    %v139 = vld [vmem:[#allocation8 + $0x24] sm:$0xf]
    %v140 = vld [vmem:[#allocation8 + $0x28] sm:$0xf]
    %v141 = vld [vmem:[#allocation8 + $0x2c] sm:$0xf]
    %v142 = vld [vmem:[#allocation8 + $0x30] sm:$0xf]
    %v143 = vld [vmem:[#allocation8 + $0x34] sm:$0xf]
    %v144 = vld [vmem:[#allocation8 + $0x38] sm:$0xf]
    %v145 = vld [vmem:[#allocation8 + $0x3c] sm:$0xf]
    %v146 = vld [vmem:[%s4] sm:$0x1]
    %v148 = vperm.slane %v146, 0
    %v152 = vunpack.c.l.b16 %v128
    %v153 = vunpack.c.l.b16 %v129
    %v154 = vpack.c.b16 %v153, %v152
    %v172 = vunpack.c.l.b16 %v130
    %v173 = vunpack.c.l.b16 %v131
    %v174 = vunpack.c.l.b16 %v132
    %v175 = vunpack.c.l.b16 %v133
    %v176 = vunpack.c.l.b16 %v134
    %v177 = vunpack.c.l.b16 %v135
    %v178 = vunpack.c.l.b16 %v136
    %v179 = vunpack.c.l.b16 %v137
    %v180 = vunpack.c.l.b16 %v138
    %v181 = vunpack.c.l.b16 %v139
    %v182 = vunpack.c.l.b16 %v140
    %v183 = vunpack.c.l.b16 %v141
    %v184 = vunpack.c.l.b16 %v142
    %v185 = vunpack.c.l.b16 %v143
    %v186 = vunpack.c.l.b16 %v144
    %v187 = vunpack.c.l.b16 %v145
    %v188 = vpack.c.b16 %v173, %v172
    %v189 = vpack.c.b16 %v175, %v174
    %v190 = vpack.c.b16 %v177, %v176
    %v191 = vpack.c.b16 %v179, %v178
    %v192 = vpack.c.b16 %v181, %v180
    %v193 = vpack.c.b16 %v183, %v182
    %v194 = vpack.c.b16 %v185, %v184
    %v195 = vpack.c.b16 %v187, %v186
    %204 = vmatpush.bf16.msra.mxu0 %v195
    %205 = vmatpush.bf16.msra.mxu0 %v194
    %206 = vmatpush.bf16.msra.mxu0 %v193
    %207 = vmatpush.bf16.msra.mxu0 %v192
    %208 = vmatpush.bf16.msra.mxu0 %v191
    %209 = vmatpush.bf16.msra.mxu0 %v190
    %210 = vmatpush.bf16.msra.mxu0 %v189
    %211 = vmatpush.bf16.msra.mxu0 %v188
    %212 = vmatmul.bf16.gmra.mxu0 %v154
    %v213 = vpop.f32.mrf.mxu0
    %v214 = vadd.f32 %v148, %v213
    %v215 = vpop.f32.mrf.mxu0
    %v216 = vadd.f32 %v148, %v215
    %217 = vdwg.mxu0
    %218 = vst [vmem:[#allocation9] sm:$0xff] %v214
    %219 = vst [vmem:[#allocation9 + $0x8] sm:$0xff] %v216
    // Predicated region
    $region38: #{tpu_custom_call.1} parent=1 // pred_check
      _
    $region39: #{tpu_custom_call.1} parent=1 // pred_check_branch
      %221 = sbr.rel (0) target = $region41
    $region40: #{tpu_custom_call.1} parent=1 // pred_region
      %223 = vsyncadd [#allocation5], 0
      %s224 = sshll.u32 [#allocation9], 4
      %s225 = int_to_ptr.vmem [resolvable:$true] %s224
      %s226 = sshll.u32 %s5, 4
      %s227 = int_to_ptr.hbm [resolvable:$true] %s226
      %232 = dma.vmem_to_hbm [thread:$0]  %s225, 256, %s227, [#allocation5], 128, 128, 8
    $region41: #{tpu_custom_call.1} parent=1 // pred_fallthru
      _
    // Predicated region
    $region42: #{tpu_custom_call.1} parent=1 // pred_check
      _
    $region43: #{tpu_custom_call.1} parent=1 // pred_check_branch
      %234 = sbr.rel (0) target = $region45
    $region44: #{tpu_custom_call.1} parent=1 // pred_region
      %236 = dma.done [#allocation5], 256
    $region45: #{tpu_custom_call.1} parent=1 // pred_fallthru
      _
    %237 = vsyncpa [#allocation4], 1
    %238 = vsyncpa [#allocation7], 1
    %239 = vsyncpa [#allocation5], 1

</llo_original>
